<compile_context>
chip_gen: v7x
topology: tpu7x:2x2x1
jax: 0.10.0
libtpu: 0.0.40
codegen_flags: <defaults>
</compile_context>

<pallas_src>
import functools

import numpy as np
import jax
import jax.numpy as jnp
from jax.experimental import pallas as pl
from jax.experimental.pallas import tpu as pltpu


def _round_up(x, m):
    return ((x + m - 1) // m) * m


def _choose_tile(n_rows, tile_rows):
    """Rows per grid step.

    Constraints / preferences:
      * multiple of 16 (bf16 sublane packing),
      * as large as possible up to `tile_rows` (amortize ~0.35us/step),
      * at least 2 grid steps when n_rows allows, so the "parallel" row axis
        can shard across v7x's two TensorCores,
      * a tile that divides n_rows exactly, so the wrapper never has to
        jnp.pad the inputs (a full extra HBM read+write).
    Returns (tile, padded_row_count).
    """
    tile_rows = max(16, (tile_rows // 16) * 16)
    if n_rows <= 16:
        return 16, _round_up(n_rows, 16)
    # Cap so we get >= 2 grid steps; keep the tile as large as possible below
    # that cap (long M keeps the MXU fed on v6e/v7x for c_hidden-wide matmuls).
    cap = max(16, (_round_up(n_rows, 16) // 2) // 16 * 16)
    target = min(tile_rows, cap)
    if n_rows % 16 == 0:
        for t in range(target, 15, -16):
            if n_rows % t == 0:
                return t, n_rows            # exact divisor -> no input padding
    # Rows not a multiple of 16 (or no divisor found): pad to a tile multiple.
    return target, _round_up(n_rows, target)


def _angle_resnet_kernel(s_ref, si_ref,
                         w_in_ref, w_init_ref, b0_ref,
                         w_b1_ref, b_b1_ref,
                         w_b2_ref, b_b2_ref,
                         w_out_ref, b_out_ref, pair_sel_ref,
                         out_ref, *, out_dim, eps):
    """One row-tile of the AngleResnet trunk + fused angle normalization.

    Matmul operands go to the MXU in bf16; bias adds, residuals and the L2
    normalization stay in f32.
    """
    mxu_dt = w_in_ref.dtype
    f32 = jnp.float32

    # Inputs arrive in bf16; ReLU is exact in bf16 (no f32 round trip).
    s = jnp.maximum(s_ref[...], 0).astype(mxu_dt)
    si = jnp.maximum(si_ref[...], 0).astype(mxu_dt)

    # linear_in(relu(s)) + linear_initial(relu(s_initial)) with b0=b_in+b_init.
    # Two accumulating dots (no concat copy), f32 accumulation.
    a = (jnp.dot(s, w_in_ref[...], preferred_element_type=f32)
         + jnp.dot(si, w_init_ref[...], preferred_element_type=f32)
         + b0_ref[...])

    # Resnet blocks (statically unrolled): a += linear_2(relu(linear_1(relu(a))))
    n_blocks = w_b1_ref.shape[0]
    for blk in range(n_blocks):
        t = jnp.dot(jnp.maximum(a, 0.0).astype(mxu_dt), w_b1_ref[blk],
                    preferred_element_type=f32) + b_b1_ref[blk]
        t = jnp.dot(jnp.maximum(t, 0.0).astype(mxu_dt), w_b2_ref[blk],
                    preferred_element_type=f32) + b_b2_ref[blk]
        a = a + t

    # linear_out with duplicated columns: lanes [0:out_dim] and
    # [out_dim:2*out_dim] both hold the unnormalized angles (pad lanes are 0).
    out = jnp.dot(jnp.maximum(a, 0.0).astype(mxu_dt), w_out_ref[...],
                  preferred_element_type=f32) + b_out_ref[...]

    # Fused per-angle L2 normalization (all f32).  pair_sel is a constant
    # 0/1 matrix that places (x_m^2 + y_m^2) on the duplicated lanes
    # [out_dim:2*out_dim] (and 0 elsewhere) without any lane shuffles.
    sq = out * out
    pair = jnp.dot(sq, pair_sel_ref[...], preferred_element_type=f32)
    inv = jax.lax.rsqrt(jnp.maximum(pair, eps))
    lane = jax.lax.broadcasted_iota(jnp.int32, out.shape, 1)
    # lanes < out_dim: unnormalized; lanes >= out_dim: normalized (pad lanes
    # stay 0 since out == 0 there).
    out_ref[...] = jnp.where(lane < out_dim, out, out * inv).astype(out_ref.dtype)


def _prepare_kernel_params(params, out_pad, compute_dtype):
    """Fuse / pad the module's weights into the layout the kernel consumes."""
    c_hidden, out_dim = params["w_out"].shape
    assert 2 * out_dim <= out_pad

    # Duplicate linear_out columns so one matmul produces both copies of the
    # unnormalized angles inside the padded 128-lane output block.
    w_dup = jnp.zeros((c_hidden, out_pad), jnp.float32)
    w_dup = w_dup.at[:, :out_dim].set(params["w_out"])
    w_dup = w_dup.at[:, out_dim:2 * out_dim].set(params["w_out"])
    b_dup = jnp.zeros((1, out_pad), jnp.float32)
    b_dup = b_dup.at[:, :out_dim].set(params["b_out"][0])
    b_dup = b_dup.at[:, out_dim:2 * out_dim].set(params["b_out"][0])

    # Pair-sum selector: (sq @ sel)[:, out_dim + 2m (+1)] = x_m^2 + y_m^2.
    sel = np.zeros((out_pad, out_pad), np.float32)
    for m in range(out_dim // 2):
        sel[2 * m:2 * m + 2, out_dim + 2 * m] = 1.0
        sel[2 * m:2 * m + 2, out_dim + 2 * m + 1] = 1.0

    return dict(
        w_in=params["w_in"].astype(compute_dtype),
        w_init=params["w_init"].astype(compute_dtype),
        b0=(params["b_in"] + params["b_init"]).astype(jnp.float32),
        w_b1=params["w_b1"].astype(compute_dtype),
        b_b1=params["b_b1"].astype(jnp.float32),
        w_b2=params["w_b2"].astype(compute_dtype),
        b_b2=params["b_b2"].astype(jnp.float32),
        w_out=w_dup.astype(compute_dtype),
        b_out=b_dup.astype(jnp.float32),
        pair_sel=jnp.asarray(sel),
    )


def _resident(shape):
    """Grid-invariant (weight) BlockSpec."""
    if len(shape) == 2:
        return pl.BlockSpec(shape, lambda i: (0, 0))
    return pl.BlockSpec(shape, lambda i: (0, 0, 0))


def angle_resnet_forward(s, s_initial, params, *, no_angles, eps,
                         tile_rows=1024, compute_dtype=jnp.bfloat16):
    """AngleResnet forward. Returns (unnormalized_s, normalized_s), both
    [*, no_angles, 2], matching the PyTorch module (matmuls in bf16 with f32
    accumulation; normalization in f32).  Pass bf16 inputs to avoid the
    wrapper-side cast."""
    lead_shape = s.shape[:-1]
    c_in = s.shape[-1]
    n_rows = 1
    for d in lead_shape:
        n_rows *= d

    c_hidden = params["w_in"].shape[1]
    n_blocks = params["w_b1"].shape[0]
    out_dim = params["w_out"].shape[1]                 # no_angles * 2
    assert out_dim == no_angles * 2
    out_pad = _round_up(2 * out_dim, 128)              # [unnorm | norm | 0...]

    tile, n_pad = _choose_tile(n_rows, tile_rows)

    # bf16 inputs: halves the dominant HBM DMA (ReLU/cast commute, so this is
    # numerically identical to casting the relu'd f32 inputs).
    s2 = s.reshape(n_rows, c_in).astype(compute_dtype)
    si2 = s_initial.reshape(n_rows, c_in).astype(compute_dtype)
    if n_pad != n_rows:
        s2 = jnp.pad(s2, ((0, n_pad - n_rows), (0, 0)))
        si2 = jnp.pad(si2, ((0, n_pad - n_rows), (0, 0)))

    kp = _prepare_kernel_params(params, out_pad, compute_dtype)
    grid = (n_pad // tile,)

    kernel = functools.partial(_angle_resnet_kernel,
                               out_dim=out_dim, eps=float(eps))

    out = pl.pallas_call(
        kernel,
        out_shape=jax.ShapeDtypeStruct((n_pad, out_pad), jnp.float32),
        grid_spec=pltpu.PrefetchScalarGridSpec(
            num_scalar_prefetch=0,
            grid=grid,
            in_specs=[
                pl.BlockSpec((tile, c_in), lambda i: (i, 0)),   # s (bf16)
                pl.BlockSpec((tile, c_in), lambda i: (i, 0)),   # s_initial
                _resident((c_in, c_hidden)),                    # w_in
                _resident((c_in, c_hidden)),                    # w_init
                _resident((1, c_hidden)),                       # b_in + b_init
                _resident((n_blocks, c_hidden, c_hidden)),      # block linear_1 W
                _resident((n_blocks, 1, c_hidden)),             # block linear_1 b
                _resident((n_blocks, c_hidden, c_hidden)),      # block linear_2 W
                _resident((n_blocks, 1, c_hidden)),             # block linear_2 b
                _resident((c_hidden, out_pad)),                 # w_out (duplicated)
                _resident((1, out_pad)),                        # b_out (duplicated)
                _resident((out_pad, out_pad)),                  # pair-sum selector
            ],
            out_specs=pl.BlockSpec((tile, out_pad), lambda i: (i, 0)),
        ),
        compiler_params=pltpu.CompilerParams(
            dimension_semantics=("parallel",),
            # Explicit scoped-VMEM budget: above the 16/32 MiB defaults so
            # tile_rows can be raised, with headroom below v7x's 64 MiB.
            vmem_limit_bytes=48 * 1024 * 1024,
        ),
    )(s2, si2,
      kp["w_in"], kp["w_init"], kp["b0"],
      kp["w_b1"], kp["b_b1"], kp["w_b2"], kp["b_b2"],
      kp["w_out"], kp["b_out"], kp["pair_sel"])

    out = out[:n_rows]
    unnormalized_s = out[:, :out_dim].reshape(lead_shape + (no_angles, 2))
    normalized_s = out[:, out_dim:2 * out_dim].reshape(lead_shape + (no_angles, 2))
    return unnormalized_s, normalized_s


def make_params(key, c_in, c_hidden, no_blocks, no_angles):
    """Deterministic synthetic parameters (f32 storage). Weights are stored
    (in, out) so the kernel computes y = x @ W + b (== torch y = x @ W_t.T + b)."""
    keys = jax.random.split(key, 12)
    scale = 0.1
    return {
        "w_init": scale * jax.random.normal(keys[0], (c_in, c_hidden), jnp.float32),
        "b_init": scale * jax.random.normal(keys[1], (1, c_hidden), jnp.float32),
        "w_in":   scale * jax.random.normal(keys[2], (c_in, c_hidden), jnp.float32),
        "b_in":   scale * jax.random.normal(keys[3], (1, c_hidden), jnp.float32),
        "w_b1":   scale * jax.random.normal(keys[4], (no_blocks, c_hidden, c_hidden), jnp.float32),
        "b_b1":   scale * jax.random.normal(keys[5], (no_blocks, 1, c_hidden), jnp.float32),
        "w_b2":   scale * jax.random.normal(keys[6], (no_blocks, c_hidden, c_hidden), jnp.float32),
        "b_b2":   scale * jax.random.normal(keys[7], (no_blocks, 1, c_hidden), jnp.float32),
        "w_out":  scale * jax.random.normal(keys[8], (c_hidden, no_angles * 2), jnp.float32),
        "b_out":  scale * jax.random.normal(keys[9], (1, no_angles * 2), jnp.float32),
    }


def _reference_forward(s, s_initial, params, *, no_angles, eps,
                       compute_dtype=jnp.bfloat16):
    """Pure-JAX reference mirroring the PyTorch forward, with the same mixed
    precision as the kernel (bf16 matmul operands, f32 accumulation; the true
    f32 PyTorch module differs from this by the bf16 rounding of weights and
    activations)."""
    relu = lambda x: jnp.maximum(x, 0.0)

    def dot(x, w):
        return jnp.dot(x.astype(compute_dtype), w.astype(compute_dtype),
                       preferred_element_type=jnp.float32)

    si = dot(relu(s_initial), params["w_init"]) + params["b_init"]
    a = dot(relu(s), params["w_in"]) + params["b_in"] + si
    for blk in range(params["w_b1"].shape[0]):
        t = dot(relu(a), params["w_b1"][blk]) + params["b_b1"][blk]
        t = dot(relu(t), params["w_b2"][blk]) + params["b_b2"][blk]
        a = a + t
    out = dot(relu(a), params["w_out"]) + params["b_out"]
    out = out.reshape(out.shape[:-1] + (no_angles, 2))
    denom = jnp.sqrt(jnp.maximum(jnp.sum(out * out, -1, keepdims=True), eps))
    return out, out / denom


if __name__ == "__main__":
    # Small shapes consistent with the module: [*, c_in] single embedding.
    batch, seq = 2, 8          # leading dims -> 16 rows
    c_in = 32
    c_hidden = 32
    no_blocks = 2
    no_angles = 7
    eps = 1e-8

    key = jax.random.PRNGKey(0)
    k_s, k_si, k_p = jax.random.split(key, 3)
    s = jax.random.normal(k_s, (batch, seq, c_in), jnp.float32)
    s_initial = jax.random.normal(k_si, (batch, seq, c_in), jnp.float32)
    params = make_params(k_p, c_in, c_hidden, no_blocks, no_angles)

    unnorm, norm = angle_resnet_forward(
        s, s_initial, params, no_angles=no_angles, eps=eps)
    jax.block_until_ready((unnorm, norm))

    # Sanity check vs. a pure-JAX reference using the same precision scheme.
    ref_unnorm, ref_norm = _reference_forward(
        s, s_initial, params, no_angles=no_angles, eps=eps,
        compute_dtype=jnp.bfloat16)
    assert unnorm.shape == (batch, seq, no_angles, 2)
    assert norm.shape == (batch, seq, no_angles, 2)
    assert jnp.allclose(unnorm, ref_unnorm, atol=5e-3, rtol=5e-3)
    assert jnp.allclose(norm, ref_norm, atol=5e-3, rtol=5e-3)

    print("KERNEL_OK")
</pallas_src>

<mosaic_0001>
module attributes {stable_mosaic.version = 11 : i64} {
  func.func @_angle_resnet_kernel(%arg0: i32, %arg1: memref<16x32xbf16, #tpu.memory_space<vmem>>, %arg2: memref<16x32xbf16, #tpu.memory_space<vmem>>, %arg3: memref<32x32xbf16, #tpu.memory_space<vmem>>, %arg4: memref<32x32xbf16, #tpu.memory_space<vmem>>, %arg5: memref<1x32xf32, #tpu.memory_space<vmem>>, %arg6: memref<2x32x32xbf16, #tpu.memory_space<vmem>>, %arg7: memref<2x1x32xf32, #tpu.memory_space<vmem>>, %arg8: memref<2x32x32xbf16, #tpu.memory_space<vmem>>, %arg9: memref<2x1x32xf32, #tpu.memory_space<vmem>>, %arg10: memref<32x128xbf16, #tpu.memory_space<vmem>>, %arg11: memref<1x128xf32, #tpu.memory_space<vmem>>, %arg12: memref<128x128xf32, #tpu.memory_space<vmem>>, %arg13: memref<16x128xf32, #tpu.memory_space<vmem>>) attributes {dimension_semantics = [#tpu.dimension_semantics<parallel>], iteration_bounds = array<i64: 1>, scalar_prefetch = 0 : i64, scratch_operands = 0 : i64, tpu.core_type = #tpu.core_type<tc>, window_params = [{transform_indices = @transform_0, window_bounds = array<i64: 16, 32>}, {transform_indices = @transform_1, window_bounds = array<i64: 16, 32>}, {pipeline_mode = #tpu.pipeline_mode<synchronous>, transform_indices = @transform_2, window_bounds = array<i64: 32, 32>}, {pipeline_mode = #tpu.pipeline_mode<synchronous>, transform_indices = @transform_3, window_bounds = array<i64: 32, 32>}, {pipeline_mode = #tpu.pipeline_mode<synchronous>, transform_indices = @transform_4, window_bounds = array<i64: 1, 32>}, {pipeline_mode = #tpu.pipeline_mode<synchronous>, transform_indices = @transform_5, window_bounds = array<i64: 2, 32, 32>}, {pipeline_mode = #tpu.pipeline_mode<synchronous>, transform_indices = @transform_6, window_bounds = array<i64: 2, 1, 32>}, {pipeline_mode = #tpu.pipeline_mode<synchronous>, transform_indices = @transform_7, window_bounds = array<i64: 2, 32, 32>}, {pipeline_mode = #tpu.pipeline_mode<synchronous>, transform_indices = @transform_8, window_bounds = array<i64: 2, 1, 32>}, {pipeline_mode = #tpu.pipeline_mode<synchronous>, transform_indices = @transform_9, window_bounds = array<i64: 32, 128>}, {pipeline_mode = #tpu.pipeline_mode<synchronous>, transform_indices = @transform_10, window_bounds = array<i64: 1, 128>}, {pipeline_mode = #tpu.pipeline_mode<synchronous>, transform_indices = @transform_11, window_bounds = array<i64: 128, 128>}, {transform_indices = @transform_12, window_bounds = array<i64: 16, 128>}]} {
    %c0 = arith.constant 0 : index
    %c0_0 = arith.constant 0 : index
    %0 = vector.load %arg1[%c0, %c0_0] : memref<16x32xbf16, #tpu.memory_space<vmem>>, vector<16x32xbf16>
    %cst = arith.constant 0.000000e+00 : bf16
    %1 = vector.broadcast %cst : bf16 to vector<16x32xbf16>
    %2 = arith.maximumf %0, %1 : vector<16x32xbf16>
    %c0_1 = arith.constant 0 : index
    %c0_2 = arith.constant 0 : index
    %3 = vector.load %arg2[%c0_1, %c0_2] : memref<16x32xbf16, #tpu.memory_space<vmem>>, vector<16x32xbf16>
    %cst_3 = arith.constant 0.000000e+00 : bf16
    %4 = vector.broadcast %cst_3 : bf16 to vector<16x32xbf16>
    %5 = arith.maximumf %3, %4 : vector<16x32xbf16>
    %c0_4 = arith.constant 0 : index
    %c0_5 = arith.constant 0 : index
    %6 = vector.load %arg3[%c0_4, %c0_5] : memref<32x32xbf16, #tpu.memory_space<vmem>>, vector<32x32xbf16>
    %cst_6 = arith.constant dense<0.000000e+00> : vector<16x32xf32>
    %7 = tpu.matmul %2, %6, %cst_6 {dimension_numbers = #tpu.dot_dimension_numbers<[1], [0], [0], [1], [0, 0, 1, 1], [], []>} : vector<16x32xbf16>, vector<32x32xbf16>, vector<16x32xf32> -> vector<16x32xf32>
    %c0_7 = arith.constant 0 : index
    %c0_8 = arith.constant 0 : index
    %8 = vector.load %arg4[%c0_7, %c0_8] : memref<32x32xbf16, #tpu.memory_space<vmem>>, vector<32x32xbf16>
    %cst_9 = arith.constant dense<0.000000e+00> : vector<16x32xf32>
    %9 = tpu.matmul %5, %8, %cst_9 {dimension_numbers = #tpu.dot_dimension_numbers<[1], [0], [0], [1], [0, 0, 1, 1], [], []>} : vector<16x32xbf16>, vector<32x32xbf16>, vector<16x32xf32> -> vector<16x32xf32>
    %10 = arith.addf %7, %9 : vector<16x32xf32>
    %c0_10 = arith.constant 0 : index
    %c0_11 = arith.constant 0 : index
    %11 = vector.load %arg5[%c0_10, %c0_11] : memref<1x32xf32, #tpu.memory_space<vmem>>, vector<1x32xf32>
    %12 = vector.broadcast %11 : vector<1x32xf32> to vector<16x32xf32>
    %13 = arith.addf %10, %12 : vector<16x32xf32>
    %cst_12 = arith.constant 0.000000e+00 : f32
    %14 = vector.broadcast %cst_12 : f32 to vector<16x32xf32>
    %15 = arith.maximumf %13, %14 : vector<16x32xf32>
    %16 = arith.truncf %15 : vector<16x32xf32> to vector<16x32xbf16>
    %c0_13 = arith.constant 0 : index
    %c0_14 = arith.constant 0 : index
    %c0_15 = arith.constant 0 : index
    %17 = vector.load %arg6[%c0_13, %c0_14, %c0_15] : memref<2x32x32xbf16, #tpu.memory_space<vmem>>, vector<1x32x32xbf16>
    %18 = vector.shape_cast %17 : vector<1x32x32xbf16> to vector<32x32xbf16>
    %cst_16 = arith.constant dense<0.000000e+00> : vector<16x32xf32>
    %19 = tpu.matmul %16, %18, %cst_16 {dimension_numbers = #tpu.dot_dimension_numbers<[1], [0], [0], [1], [0, 0, 1, 1], [], []>} : vector<16x32xbf16>, vector<32x32xbf16>, vector<16x32xf32> -> vector<16x32xf32>
    %c0_17 = arith.constant 0 : index
    %c0_18 = arith.constant 0 : index
    %c0_19 = arith.constant 0 : index
    %20 = vector.load %arg7[%c0_17, %c0_18, %c0_19] : memref<2x1x32xf32, #tpu.memory_space<vmem>>, vector<1x1x32xf32>
    %21 = vector.shape_cast %20 : vector<1x1x32xf32> to vector<1x32xf32>
    %22 = vector.broadcast %21 : vector<1x32xf32> to vector<16x32xf32>
    %23 = arith.addf %19, %22 : vector<16x32xf32>
    %cst_20 = arith.constant 0.000000e+00 : f32
    %24 = vector.broadcast %cst_20 : f32 to vector<16x32xf32>
    %25 = arith.maximumf %23, %24 : vector<16x32xf32>
    %26 = arith.truncf %25 : vector<16x32xf32> to vector<16x32xbf16>
    %c0_21 = arith.constant 0 : index
    %c0_22 = arith.constant 0 : index
    %c0_23 = arith.constant 0 : index
    %27 = vector.load %arg8[%c0_21, %c0_22, %c0_23] : memref<2x32x32xbf16, #tpu.memory_space<vmem>>, vector<1x32x32xbf16>
    %28 = vector.shape_cast %27 : vector<1x32x32xbf16> to vector<32x32xbf16>
    %cst_24 = arith.constant dense<0.000000e+00> : vector<16x32xf32>
    %29 = tpu.matmul %26, %28, %cst_24 {dimension_numbers = #tpu.dot_dimension_numbers<[1], [0], [0], [1], [0, 0, 1, 1], [], []>} : vector<16x32xbf16>, vector<32x32xbf16>, vector<16x32xf32> -> vector<16x32xf32>
    %c0_25 = arith.constant 0 : index
    %c0_26 = arith.constant 0 : index
    %c0_27 = arith.constant 0 : index
    %30 = vector.load %arg9[%c0_25, %c0_26, %c0_27] : memref<2x1x32xf32, #tpu.memory_space<vmem>>, vector<1x1x32xf32>
    %31 = vector.shape_cast %30 : vector<1x1x32xf32> to vector<1x32xf32>
    %32 = vector.broadcast %31 : vector<1x32xf32> to vector<16x32xf32>
    %33 = arith.addf %29, %32 : vector<16x32xf32>
    %34 = arith.addf %13, %33 : vector<16x32xf32>
    %cst_28 = arith.constant 0.000000e+00 : f32
    %35 = vector.broadcast %cst_28 : f32 to vector<16x32xf32>
    %36 = arith.maximumf %34, %35 : vector<16x32xf32>
    %37 = arith.truncf %36 : vector<16x32xf32> to vector<16x32xbf16>
    %c1 = arith.constant 1 : index
    %c0_29 = arith.constant 0 : index
    %c0_30 = arith.constant 0 : index
    %38 = vector.load %arg6[%c1, %c0_29, %c0_30] : memref<2x32x32xbf16, #tpu.memory_space<vmem>>, vector<1x32x32xbf16>
    %39 = vector.shape_cast %38 : vector<1x32x32xbf16> to vector<32x32xbf16>
    %cst_31 = arith.constant dense<0.000000e+00> : vector<16x32xf32>
    %40 = tpu.matmul %37, %39, %cst_31 {dimension_numbers = #tpu.dot_dimension_numbers<[1], [0], [0], [1], [0, 0, 1, 1], [], []>} : vector<16x32xbf16>, vector<32x32xbf16>, vector<16x32xf32> -> vector<16x32xf32>
    %c1_32 = arith.constant 1 : index
    %c0_33 = arith.constant 0 : index
    %c0_34 = arith.constant 0 : index
    %41 = vector.load %arg7[%c1_32, %c0_33, %c0_34] : memref<2x1x32xf32, #tpu.memory_space<vmem>>, vector<1x1x32xf32>
    %42 = vector.shape_cast %41 : vector<1x1x32xf32> to vector<1x32xf32>
    %43 = vector.broadcast %42 : vector<1x32xf32> to vector<16x32xf32>
    %44 = arith.addf %40, %43 : vector<16x32xf32>
    %cst_35 = arith.constant 0.000000e+00 : f32
    %45 = vector.broadcast %cst_35 : f32 to vector<16x32xf32>
    %46 = arith.maximumf %44, %45 : vector<16x32xf32>
    %47 = arith.truncf %46 : vector<16x32xf32> to vector<16x32xbf16>
    %c1_36 = arith.constant 1 : index
    %c0_37 = arith.constant 0 : index
    %c0_38 = arith.constant 0 : index
    %48 = vector.load %arg8[%c1_36, %c0_37, %c0_38] : memref<2x32x32xbf16, #tpu.memory_space<vmem>>, vector<1x32x32xbf16>
    %49 = vector.shape_cast %48 : vector<1x32x32xbf16> to vector<32x32xbf16>
    %cst_39 = arith.constant dense<0.000000e+00> : vector<16x32xf32>
    %50 = tpu.matmul %47, %49, %cst_39 {dimension_numbers = #tpu.dot_dimension_numbers<[1], [0], [0], [1], [0, 0, 1, 1], [], []>} : vector<16x32xbf16>, vector<32x32xbf16>, vector<16x32xf32> -> vector<16x32xf32>
    %c1_40 = arith.constant 1 : index
    %c0_41 = arith.constant 0 : index
    %c0_42 = arith.constant 0 : index
    %51 = vector.load %arg9[%c1_40, %c0_41, %c0_42] : memref<2x1x32xf32, #tpu.memory_space<vmem>>, vector<1x1x32xf32>
    %52 = vector.shape_cast %51 : vector<1x1x32xf32> to vector<1x32xf32>
    %53 = vector.broadcast %52 : vector<1x32xf32> to vector<16x32xf32>
    %54 = arith.addf %50, %53 : vector<16x32xf32>
    %55 = arith.addf %34, %54 : vector<16x32xf32>
    %cst_43 = arith.constant 0.000000e+00 : f32
    %56 = vector.broadcast %cst_43 : f32 to vector<16x32xf32>
    %57 = arith.maximumf %55, %56 : vector<16x32xf32>
    %58 = arith.truncf %57 : vector<16x32xf32> to vector<16x32xbf16>
    %c0_44 = arith.constant 0 : index
    %c0_45 = arith.constant 0 : index
    %59 = vector.load %arg10[%c0_44, %c0_45] : memref<32x128xbf16, #tpu.memory_space<vmem>>, vector<32x128xbf16>
    %cst_46 = arith.constant dense<0.000000e+00> : vector<16x128xf32>
    %60 = tpu.matmul %58, %59, %cst_46 {dimension_numbers = #tpu.dot_dimension_numbers<[1], [0], [0], [1], [0, 0, 1, 1], [], []>} : vector<16x32xbf16>, vector<32x128xbf16>, vector<16x128xf32> -> vector<16x128xf32>
    %c0_47 = arith.constant 0 : index
    %c0_48 = arith.constant 0 : index
    %61 = vector.load %arg11[%c0_47, %c0_48] : memref<1x128xf32, #tpu.memory_space<vmem>>, vector<1x128xf32>
    %62 = vector.broadcast %61 : vector<1x128xf32> to vector<16x128xf32>
    %63 = arith.addf %60, %62 : vector<16x128xf32>
    %64 = arith.mulf %63, %63 : vector<16x128xf32>
    %c0_49 = arith.constant 0 : index
    %c0_50 = arith.constant 0 : index
    %65 = vector.load %arg12[%c0_49, %c0_50] : memref<128x128xf32, #tpu.memory_space<vmem>>, vector<128x128xf32>
    %cst_51 = arith.constant dense<0.000000e+00> : vector<16x128xf32>
    %66 = tpu.matmul %64, %65, %cst_51 {dimension_numbers = #tpu.dot_dimension_numbers<[1], [0], [0], [1], [0, 0, 1, 1], [], []>} : vector<16x128xf32>, vector<128x128xf32>, vector<16x128xf32> -> vector<16x128xf32>
    %cst_52 = arith.constant 9.99999993E-9 : f32
    %67 = vector.broadcast %cst_52 : f32 to vector<16x128xf32>
    %68 = arith.maximumf %66, %67 : vector<16x128xf32>
    %69 = math.rsqrt %68 : vector<16x128xf32>
    %70 = tpu.iota {dimensions = array<i32: 1>} : vector<16x128xi32>
    %c14_i32 = arith.constant 14 : i32
    %71 = vector.broadcast %c14_i32 : i32 to vector<16x128xi32>
    %72 = arith.cmpi slt, %70, %71 : vector<16x128xi32>
    %73 = arith.mulf %63, %69 : vector<16x128xf32>
    %74 = arith.select %72, %63, %73 : vector<16x128xi1>, vector<16x128xf32>
    %c0_53 = arith.constant 0 : index
    %c0_54 = arith.constant 0 : index
    %75 = vector.load %arg13[%c0_53, %c0_54] : memref<16x128xf32, #tpu.memory_space<vmem>>, vector<16x128xf32>
    tpu.vector_store %arg13[%c0_53, %c0_54], %74 {strides = array<i32>} : memref<16x128xf32, #tpu.memory_space<vmem>>, vector<16x128xf32>,
    return
  }
  func.func @transform_0(%arg0: i32) -> (i32, i32) {
    %c0_i32 = arith.constant 0 : i32
    %c0_i32_0 = arith.constant 0 : i32
    return %arg0, %c0_i32 : i32, i32
  }
  func.func @transform_1(%arg0: i32) -> (i32, i32) {
    %c0_i32 = arith.constant 0 : i32
    %c0_i32_0 = arith.constant 0 : i32
    return %arg0, %c0_i32 : i32, i32
  }
  func.func @transform_2(%arg0: i32) -> (i32, i32) {
    %c0_i32 = arith.constant 0 : i32
    %c0_i32_0 = arith.constant 0 : i32
    %c0_i32_1 = arith.constant 0 : i32
    return %c0_i32, %c0_i32_0 : i32, i32
  }
  func.func @transform_3(%arg0: i32) -> (i32, i32) {
    %c0_i32 = arith.constant 0 : i32
    %c0_i32_0 = arith.constant 0 : i32
    %c0_i32_1 = arith.constant 0 : i32
    return %c0_i32, %c0_i32_0 : i32, i32
  }
  func.func @transform_4(%arg0: i32) -> (i32, i32) {
    %c0_i32 = arith.constant 0 : i32
    %c0_i32_0 = arith.constant 0 : i32
    %c0_i32_1 = arith.constant 0 : i32
    return %c0_i32, %c0_i32_0 : i32, i32
  }
  func.func @transform_5(%arg0: i32) -> (i32, i32, i32) {
    %c0_i32 = arith.constant 0 : i32
    %c0_i32_0 = arith.constant 0 : i32
    %c0_i32_1 = arith.constant 0 : i32
    %c0_i32_2 = arith.constant 0 : i32
    return %c0_i32, %c0_i32_0, %c0_i32_1 : i32, i32, i32
  }
  func.func @transform_6(%arg0: i32) -> (i32, i32, i32) {
    %c0_i32 = arith.constant 0 : i32
    %c0_i32_0 = arith.constant 0 : i32
    %c0_i32_1 = arith.constant 0 : i32
    %c0_i32_2 = arith.constant 0 : i32
    return %c0_i32, %c0_i32_0, %c0_i32_1 : i32, i32, i32
  }
  func.func @transform_7(%arg0: i32) -> (i32, i32, i32) {
    %c0_i32 = arith.constant 0 : i32
    %c0_i32_0 = arith.constant 0 : i32
    %c0_i32_1 = arith.constant 0 : i32
    %c0_i32_2 = arith.constant 0 : i32
    return %c0_i32, %c0_i32_0, %c0_i32_1 : i32, i32, i32
  }
  func.func @transform_8(%arg0: i32) -> (i32, i32, i32) {
    %c0_i32 = arith.constant 0 : i32
    %c0_i32_0 = arith.constant 0 : i32
    %c0_i32_1 = arith.constant 0 : i32
    %c0_i32_2 = arith.constant 0 : i32
    return %c0_i32, %c0_i32_0, %c0_i32_1 : i32, i32, i32
  }
  func.func @transform_9(%arg0: i32) -> (i32, i32) {
    %c0_i32 = arith.constant 0 : i32
    %c0_i32_0 = arith.constant 0 : i32
    %c0_i32_1 = arith.constant 0 : i32
    return %c0_i32, %c0_i32_0 : i32, i32
  }
  func.func @transform_10(%arg0: i32) -> (i32, i32) {
    %c0_i32 = arith.constant 0 : i32
    %c0_i32_0 = arith.constant 0 : i32
    %c0_i32_1 = arith.constant 0 : i32
    return %c0_i32, %c0_i32_0 : i32, i32
  }
  func.func @transform_11(%arg0: i32) -> (i32, i32) {
    %c0_i32 = arith.constant 0 : i32
    %c0_i32_0 = arith.constant 0 : i32
    %c0_i32_1 = arith.constant 0 : i32
    return %c0_i32, %c0_i32_0 : i32, i32
  }
  func.func @transform_12(%arg0: i32) -> (i32, i32) {
    %c0_i32 = arith.constant 0 : i32
    %c0_i32_0 = arith.constant 0 : i32
    return %arg0, %c0_i32 : i32, i32
  }
}

</mosaic_0001>

<llo_original>
// kernel: tpu_custom_call.1
$region0: #{tpu_custom_call.1}
  #allocation0 [shape = 'u32[]', space=smem, size = 0x4, offset = 0x4, fixed_abs, tag = 'smem constant byte address 0x4 - core index']
  #allocation1 [shape = 'u32[144,128]{1,0:T(1,128)}', space=vmem, size = 0x12000, scoped, tag = 'internal scratch']
  %s0 = inlined_call_operand.hbm [shape: bf16[16,32], index: 0, kind: input, shape index: {}]
  %s1 = inlined_call_operand.hbm [shape: bf16[16,32], index: 1, kind: input, shape index: {}]
  %s2 = inlined_call_operand.hbm [shape: bf16[32,32], index: 2, kind: input, shape index: {}]
  %s3 = inlined_call_operand.hbm [shape: bf16[32,32], index: 3, kind: input, shape index: {}]
  %s4 = inlined_call_operand.vmem [shape: f32[1,32], index: 4, kind: input, shape index: {}]
  %s5 = inlined_call_operand.hbm [shape: bf16[2,32,32], index: 5, kind: input, shape index: {}]
  %s6 = inlined_call_operand.vmem [shape: f32[2,1,32], index: 6, kind: input, shape index: {}]
  %s7 = inlined_call_operand.hbm [shape: bf16[2,32,32], index: 7, kind: input, shape index: {}]
  %s8 = inlined_call_operand.vmem [shape: f32[2,1,32], index: 8, kind: input, shape index: {}]
  %s9 = inlined_call_operand.vmem [shape: bf16[32,128], index: 9, kind: input, shape index: {}]
  %s10 = inlined_call_operand.vmem [shape: f32[1,128], index: 10, kind: input, shape index: {}]
  %s11 = inlined_call_operand.hbm [shape: f32[128,128], index: 11, kind: input, shape index: {}]
  %s12 = inlined_call_operand.hbm [shape: f32[16,128], index: 12, kind: output, shape index: {}]
  %s13 = sld [smem:[#allocation0]]
  $region86: #{tpu_custom_call.1} parent=0
    _
  %s15 = ssub.s32 1, %s13
  %s16 = scalar_select 0, %s15, %s13
  $region1: #{tpu_custom_call.1} parent=0
    #allocation2 [shape = 'u8[4096]{0}', space=vmem, size = 0x1000, scoped, tag = 'input window, operand 0, single buffered']
    #allocation3 [shape = 's32[1]{0}', space=sflag, size = 0x4, scoped, tag = 'scoped memory for tpu_custom_call.1']
    #allocation4 [shape = 's32[1]{0}', space=sflag, size = 0x4, scoped, tag = 'scoped memory for tpu_custom_call.1']
    #allocation5 [shape = 'u8[4096]{0}', space=vmem, size = 0x1000, scoped, tag = 'input window, operand 1, single buffered']
    #allocation6 [shape = 's32[1]{0}', space=sflag, size = 0x4, scoped, tag = 'scoped memory for tpu_custom_call.1']
    #allocation7 [shape = 'u8[8192]{0}', space=vmem, size = 0x2000, scoped, tag = 'input window, operand 2, single buffered']
    #allocation8 [shape = 'u8[8192]{0}', space=vmem, size = 0x2000, scoped, tag = 'input window, operand 3, single buffered']
    #allocation9 [shape = 's32[1]{0}', space=sflag, size = 0x4, scoped, tag = 'scoped memory for tpu_custom_call.1']
    #allocation10 [shape = 'u8[16384]{0}', space=vmem, size = 0x4000, scoped, tag = 'input window, operand 5, single buffered']
    #allocation11 [shape = 'u8[16384]{0}', space=vmem, size = 0x4000, scoped, tag = 'input window, operand 7, single buffered']
    #allocation12 [shape = 's32[1]{0}', space=sflag, size = 0x4, scoped, tag = 'scoped memory for tpu_custom_call.1']
    #allocation13 [shape = 'u8[65536]{0}', space=vmem, size = 0x10000, scoped, tag = 'input window, operand 11, single buffered']
    #allocation14 [shape = 'u8[8192]{0}', space=vmem, size = 0x2000, scoped, tag = 'output window, operand 0, single buffered']
    %17 = vsyncpa [#allocation3], 0
    %18 = vsyncpa [#allocation6], 0
    %19 = vsyncpa [#allocation9], 0
    %20 = vsyncpa [#allocation12], 0
    %21 = vsyncpa [#allocation4], 0
    // Predicated region
    $region2: #{tpu_custom_call.1} parent=1 // pred_check
      _
    $region3: #{tpu_custom_call.1} parent=1 // pred_check_branch
      %23 = sbr.rel (0) target = $region5
    $region4: #{tpu_custom_call.1} parent=1 // pred_region
      %s25 = ssub.s32 128, 128
      %26 = vsyncadd [#allocation3], %s25
      %s27 = sshll.u32 [#allocation2], 4
      %s28 = int_to_ptr.vmem [resolvable:$true] %s27
      %33 = dma.hbm_to_vmem [thread:$0]  %s0, 128, %s28, [#allocation3], 64, 64, 4
    $region5: #{tpu_custom_call.1} parent=1 // pred_fallthru
      _
    // Predicated region
    $region6: #{tpu_custom_call.1} parent=1 // pred_check
      _
    $region7: #{tpu_custom_call.1} parent=1 // pred_check_branch
      %35 = sbr.rel (0) target = $region9
    $region8: #{tpu_custom_call.1} parent=1 // pred_region
      %s37 = ssub.s32 128, 128
      %38 = vsyncadd [#allocation6], %s37
      %s39 = sshll.u32 [#allocation5], 4
      %s40 = int_to_ptr.vmem [resolvable:$true] %s39
      %45 = dma.hbm_to_vmem [thread:$0]  %s1, 128, %s40, [#allocation6], 64, 64, 4
    $region9: #{tpu_custom_call.1} parent=1 // pred_fallthru
      _
    // Predicated region
    $region10: #{tpu_custom_call.1} parent=1 // pred_check
      _
    $region11: #{tpu_custom_call.1} parent=1 // pred_check_branch
      %47 = sbr.rel (0) target = $region13
    $region12: #{tpu_custom_call.1} parent=1 // pred_region
      %s49 = ssub.s32 256, 256
      %50 = vsyncadd [#allocation6], %s49
      %s51 = sshll.u32 [#allocation7], 4
      %s52 = int_to_ptr.vmem [resolvable:$true] %s51
      %57 = dma.hbm_to_vmem [thread:$0]  %s2, 256, %s52, [#allocation6], 64, 64, 4
    $region13: #{tpu_custom_call.1} parent=1 // pred_fallthru
      _
    // Predicated region
    $region14: #{tpu_custom_call.1} parent=1 // pred_check
      _
    $region15: #{tpu_custom_call.1} parent=1 // pred_check_branch
      %59 = sbr.rel (0) target = $region17
    $region16: #{tpu_custom_call.1} parent=1 // pred_region
      %s61 = ssub.s32 256, 256
      %62 = vsyncadd [#allocation9], %s61
      %s63 = sshll.u32 [#allocation8], 4
      %s64 = int_to_ptr.vmem [resolvable:$true] %s63
      %69 = dma.hbm_to_vmem [thread:$0]  %s3, 256, %s64, [#allocation9], 64, 64, 4
    $region17: #{tpu_custom_call.1} parent=1 // pred_fallthru
      _
    // Predicated region
    $region18: #{tpu_custom_call.1} parent=1 // pred_check
      _
    $region19: #{tpu_custom_call.1} parent=1 // pred_check_branch
      %71 = sbr.rel (0) target = $region21
    $region20: #{tpu_custom_call.1} parent=1 // pred_region
      _
    $region21: #{tpu_custom_call.1} parent=1 // pred_fallthru
      _
    // Predicated region
    $region22: #{tpu_custom_call.1} parent=1 // pred_check
      _
    $region23: #{tpu_custom_call.1} parent=1 // pred_check_branch
      %73 = sbr.rel (0) target = $region25
    $region24: #{tpu_custom_call.1} parent=1 // pred_region
      %s75 = ssub.s32 512, 512
      %76 = vsyncadd [#allocation9], %s75
      %s77 = sshll.u32 [#allocation10], 4
      %s78 = int_to_ptr.vmem [resolvable:$true] %s77
      %83 = dma.hbm_to_vmem [thread:$0]  %s5, 512, %s78, [#allocation9], 64, 64, 4
    $region25: #{tpu_custom_call.1} parent=1 // pred_fallthru
      _
    // Predicated region
    $region26: #{tpu_custom_call.1} parent=1 // pred_check
      _
    $region27: #{tpu_custom_call.1} parent=1 // pred_check_branch
      %85 = sbr.rel (0) target = $region29
    $region28: #{tpu_custom_call.1} parent=1 // pred_region
      _
    $region29: #{tpu_custom_call.1} parent=1 // pred_fallthru
      _
    // Predicated region
    $region30: #{tpu_custom_call.1} parent=1 // pred_check
      _
    $region31: #{tpu_custom_call.1} parent=1 // pred_check_branch
      %87 = sbr.rel (0) target = $region33
    $region32: #{tpu_custom_call.1} parent=1 // pred_region
      %s89 = ssub.s32 512, 512
      %90 = vsyncadd [#allocation12], %s89
      %s91 = sshll.u32 [#allocation11], 4
      %s92 = int_to_ptr.vmem [resolvable:$true] %s91
      %97 = dma.hbm_to_vmem [thread:$0]  %s7, 512, %s92, [#allocation12], 64, 64, 4
    $region33: #{tpu_custom_call.1} parent=1 // pred_fallthru
      _
    // Predicated region
    $region34: #{tpu_custom_call.1} parent=1 // pred_check
      _
    $region35: #{tpu_custom_call.1} parent=1 // pred_check_branch
      %99 = sbr.rel (0) target = $region37
    $region36: #{tpu_custom_call.1} parent=1 // pred_region
      _
    $region37: #{tpu_custom_call.1} parent=1 // pred_fallthru
      _
    // Predicated region
    $region38: #{tpu_custom_call.1} parent=1 // pred_check
      _
    $region39: #{tpu_custom_call.1} parent=1 // pred_check_branch
      %101 = sbr.rel (0) target = $region41
    $region40: #{tpu_custom_call.1} parent=1 // pred_region
      _
    $region41: #{tpu_custom_call.1} parent=1 // pred_fallthru
      _
    // Predicated region
    $region42: #{tpu_custom_call.1} parent=1 // pred_check
      _
    $region43: #{tpu_custom_call.1} parent=1 // pred_check_branch
      %103 = sbr.rel (0) target = $region45
    $region44: #{tpu_custom_call.1} parent=1 // pred_region
      _
    $region45: #{tpu_custom_call.1} parent=1 // pred_fallthru
      _
    // Predicated region
    $region46: #{tpu_custom_call.1} parent=1 // pred_check
      _
    $region47: #{tpu_custom_call.1} parent=1 // pred_check_branch
      %105 = sbr.rel (0) target = $region49
    $region48: #{tpu_custom_call.1} parent=1 // pred_region
      %s107 = ssub.s32 2048, 2048
      %108 = vsyncadd [#allocation12], %s107
      %s109 = sshll.u32 [#allocation13], 4
      %s110 = int_to_ptr.vmem [resolvable:$true] %s109
      %115 = dma.hbm_to_vmem [thread:$0]  %s11, 2048, %s110, [#allocation12], 128, 128, 8
    $region49: #{tpu_custom_call.1} parent=1 // pred_fallthru
      _
    // Predicated region
    $region50: #{tpu_custom_call.1} parent=1 // pred_check
      _
    $region51: #{tpu_custom_call.1} parent=1 // pred_check_branch
      %117 = sbr.rel (0) target = $region53
    $region52: #{tpu_custom_call.1} parent=1 // pred_region
      %118 = dma.done [#allocation3], 128
    $region53: #{tpu_custom_call.1} parent=1 // pred_fallthru
      _
    // Predicated region
    $region54: #{tpu_custom_call.1} parent=1 // pred_check
      _
    $region55: #{tpu_custom_call.1} parent=1 // pred_check_branch
      %120 = sbr.rel (0) target = $region57
    $region56: #{tpu_custom_call.1} parent=1 // pred_region
      %121 = dma.done [#allocation6], 128
    $region57: #{tpu_custom_call.1} parent=1 // pred_fallthru
      _
    // Predicated region
    $region58: #{tpu_custom_call.1} parent=1 // pred_check
      _
    $region59: #{tpu_custom_call.1} parent=1 // pred_check_branch
      %123 = sbr.rel (0) target = $region61
    $region60: #{tpu_custom_call.1} parent=1 // pred_region
      %124 = dma.done [#allocation6], 256
    $region61: #{tpu_custom_call.1} parent=1 // pred_fallthru
      _
    // Predicated region
    $region62: #{tpu_custom_call.1} parent=1 // pred_check
      _
    $region63: #{tpu_custom_call.1} parent=1 // pred_check_branch
      %126 = sbr.rel (0) target = $region65
    $region64: #{tpu_custom_call.1} parent=1 // pred_region
      %127 = dma.done [#allocation9], 256
    $region65: #{tpu_custom_call.1} parent=1 // pred_fallthru
      _
    // Predicated region
    $region66: #{tpu_custom_call.1} parent=1 // pred_check
      _
    $region67: #{tpu_custom_call.1} parent=1 // pred_check_branch
      %129 = sbr.rel (0) target = $region69
    $region68: #{tpu_custom_call.1} parent=1 // pred_region
      %130 = dma.done [#allocation9], 512
    $region69: #{tpu_custom_call.1} parent=1 // pred_fallthru
      _
    // Predicated region
    $region70: #{tpu_custom_call.1} parent=1 // pred_check
      _
    $region71: #{tpu_custom_call.1} parent=1 // pred_check_branch
      %132 = sbr.rel (0) target = $region73
    $region72: #{tpu_custom_call.1} parent=1 // pred_region
      %133 = dma.done [#allocation12], 512
    $region73: #{tpu_custom_call.1} parent=1 // pred_fallthru
      _
    // Predicated region
    $region74: #{tpu_custom_call.1} parent=1 // pred_check
      _
    $region75: #{tpu_custom_call.1} parent=1 // pred_check_branch
      %135 = sbr.rel (0) target = $region77
    $region76: #{tpu_custom_call.1} parent=1 // pred_region
      %136 = dma.done [#allocation12], 2048
    $region77: #{tpu_custom_call.1} parent=1 // pred_fallthru
      _
    %v138 = vld [vmem:[#allocation2] sm:$0xf]
    %v139 = vld [vmem:[#allocation2 + $0x4] sm:$0xf]
    %v140 = vmax.bf16 %v138, 0
    %v141 = vmax.bf16 %v139, 0
    %v142 = vld [vmem:[#allocation5] sm:$0xf]
    %v143 = vld [vmem:[#allocation5 + $0x4] sm:$0xf]
    %v144 = vmax.bf16 %v142, 0
    %v145 = vmax.bf16 %v143, 0
    %v146 = vld [vmem:[#allocation7] sm:$0xf]
    %v147 = vld [vmem:[#allocation7 + $0x4] sm:$0xf]
    %v148 = vld [vmem:[#allocation7 + $0x8] sm:$0xf]
    %v149 = vld [vmem:[#allocation7 + $0xc] sm:$0xf]
    %v150 = vld [vmem:[#allocation8] sm:$0xf]
    %v151 = vld [vmem:[#allocation8 + $0x4] sm:$0xf]
    %v152 = vld [vmem:[#allocation8 + $0x8] sm:$0xf]
    %v153 = vld [vmem:[#allocation8 + $0xc] sm:$0xf]
    %v156 = vunpack.c.l.b16 %v144
    %v157 = vunpack.c.l.b16 %v145
    %v158 = vpack.c.b16 %v157, %v156
    %v163 = vunpack.c.l.b16 %v150
    %v164 = vunpack.c.l.b16 %v151
    %v165 = vunpack.c.l.b16 %v152
    %v166 = vunpack.c.l.b16 %v153
    %v167 = vpack.c.b16 %v164, %v163
    %v168 = vpack.c.b16 %v166, %v165
    %vm171 = vcmask 261120
    %v173 = vsel %vm171, %v158, 0
    %175 = vmatprep.subr.bf16.mxu0 0
    %176 = vmatpush1.bf16.msra.mxu0 %v167
    %177 = vmatprep.subr.bf16.mxu0 0
    %178 = vmatpush1.bf16.msra.mxu0 %v168
    %179 = vmatprep.subr.bf16.mxu0 0
    %180 = vmatpush1.bf16.msra.mxu0 0
    %181 = vmatprep.subr.bf16.mxu0 0
    %182 = vmatpush1.bf16.msra.mxu0 0
    %183 = vmatprep.subr.bf16.mxu0 0
    %184 = vmatpush1.bf16.msra.mxu0 0
    %185 = vmatprep.subr.bf16.mxu0 0
    %186 = vmatpush1.bf16.msra.mxu0 0
    %187 = vmatprep.subr.bf16.mxu0 0
    %188 = vmatpush1.bf16.msra.mxu0 0
    %189 = vmatprep.subr.bf16.mxu0 0
    %190 = vmatpush1.bf16.msra.mxu0 0
    %191 = vmatprep.subr.bf16.mxu0 0
    %192 = vmatpush1.bf16.msra.mxu0 0
    %193 = vmatprep.subr.bf16.mxu0 0
    %194 = vmatpush1.bf16.msra.mxu0 0
    %195 = vmatprep.subr.bf16.mxu0 0
    %196 = vmatpush1.bf16.msra.mxu0 0
    %197 = vmatprep.subr.bf16.mxu0 0
    %198 = vmatpush1.bf16.msra.mxu0 0
    %199 = vmatprep.subr.bf16.mxu0 0
    %200 = vmatpush1.bf16.msra.mxu0 0
    %201 = vmatprep.subr.bf16.mxu0 0
    %202 = vmatpush1.bf16.msra.mxu0 0
    %203 = vmatprep.subr.bf16.mxu0 0
    %204 = vmatpush1.bf16.msra.mxu0 0
    %205 = vmatprep.subr.bf16.mxu0 0
    %206 = vmatpush1.bf16.msra.mxu0 0
    %207 = vmatprep.mubr.bf16.mxu0 0
    %208 = vmatmul.mubr.bf16.gmra.mrb[0].mxu0 %v173
    %v209 = vpop.f32.mrb[0].mxu0
    %v210 = vadd.f32 0.0, %v209
    %v211 = vpop.f32.mrb[0].mxu0
    %v212 = vpop.f32.mrb[0].mxu0
    %v213 = vadd.f32 0.0, %v212
    %v214 = vpop.f32.mrb[0].mxu0
    %215 = vdwg.mxu0
    %v218 = vunpack.c.l.b16 %v140
    %v219 = vunpack.c.l.b16 %v141
    %v220 = vpack.c.b16 %v219, %v218
    %v225 = vunpack.c.l.b16 %v146
    %v226 = vunpack.c.l.b16 %v147
    %v227 = vunpack.c.l.b16 %v148
    %v228 = vunpack.c.l.b16 %v149
    %v229 = vpack.c.b16 %v226, %v225
    %v230 = vpack.c.b16 %v228, %v227
    %v234 = vsel %vm171, %v220, 0
    %236 = vmatprep.subr.bf16.mxu0 0
    %237 = vmatpush1.bf16.msra.mxu0 %v229
    %238 = vmatprep.subr.bf16.mxu0 0
    %239 = vmatpush1.bf16.msra.mxu0 %v230
    %240 = vmatprep.subr.bf16.mxu0 0
    %241 = vmatpush1.bf16.msra.mxu0 0
    %242 = vmatprep.subr.bf16.mxu0 0
    %243 = vmatpush1.bf16.msra.mxu0 0
    %244 = vmatprep.subr.bf16.mxu0 0
    %245 = vmatpush1.bf16.msra.mxu0 0
    %246 = vmatprep.subr.bf16.mxu0 0
    %247 = vmatpush1.bf16.msra.mxu0 0
    %248 = vmatprep.subr.bf16.mxu0 0
    %249 = vmatpush1.bf16.msra.mxu0 0
    %250 = vmatprep.subr.bf16.mxu0 0
    %251 = vmatpush1.bf16.msra.mxu0 0
    %252 = vmatprep.subr.bf16.mxu0 0
    %253 = vmatpush1.bf16.msra.mxu0 0
    %254 = vmatprep.subr.bf16.mxu0 0
    %255 = vmatpush1.bf16.msra.mxu0 0
    %256 = vmatprep.subr.bf16.mxu0 0
    %257 = vmatpush1.bf16.msra.mxu0 0
    %258 = vmatprep.subr.bf16.mxu0 0
    %259 = vmatpush1.bf16.msra.mxu0 0
    %260 = vmatprep.subr.bf16.mxu0 0
    %261 = vmatpush1.bf16.msra.mxu0 0
    %262 = vmatprep.subr.bf16.mxu0 0
    %263 = vmatpush1.bf16.msra.mxu0 0
    %264 = vmatprep.subr.bf16.mxu0 0
    %265 = vmatpush1.bf16.msra.mxu0 0
    %266 = vmatprep.subr.bf16.mxu0 0
    %267 = vmatpush1.bf16.msra.mxu0 0
    %268 = vmatprep.mubr.bf16.mxu0 0
    %269 = vmatmul.mubr.bf16.gmra.mrb[0].mxu0 %v234
    %v270 = vpop.f32.mrb[0].mxu0
    %v271 = vadd.f32 %v210, %v270
    %v272 = vpop.f32.mrb[0].mxu0
    %v273 = vpop.f32.mrb[0].mxu0
    %v274 = vadd.f32 %v213, %v273
    %v275 = vpop.f32.mrb[0].mxu0
    %276 = vdwg.mxu0
    %v277 = vld [vmem:[%s4] sm:$0x1]
    %v279 = vlaneseq
    %v280 = vshrl.u32 %v279, 7
    %v281 = vsub.s32 0, %v280
    %v282 = vrot.slane %v277, %v281
    %v284 = vadd.f32 %v271, %v282
    %v285 = vadd.f32 %v274, %v282
    %v286 = vmax.f32 %v284, 0.0
    %v287 = vmax.f32 %v285, 0.0
    %v288 = vpack.c.bf16 %v287, %v286
    %v289 = vld [vmem:[#allocation10] sm:$0xf]
    %v290 = vld [vmem:[#allocation10 + $0x4] sm:$0xf]
    %v291 = vld [vmem:[#allocation10 + $0x8] sm:$0xf]
    %v292 = vld [vmem:[#allocation10 + $0xc] sm:$0xf]
    %v293 = vld [vmem:[%s6] sm:$0x1]
    %v295 = vlaneseq
    %v296 = vshrl.u32 %v295, 7
    %v297 = vsub.s32 0, %v296
    %v298 = vrot.slane %v293, %v297
    %v304 = vunpack.c.l.b16 %v289
    %v305 = vunpack.c.l.b16 %v290
    %v306 = vunpack.c.l.b16 %v291
    %v307 = vunpack.c.l.b16 %v292
    %v308 = vpack.c.b16 %v305, %v304
    %v309 = vpack.c.b16 %v307, %v306
    %v313 = vsel %vm171, %v288, 0
    %315 = vmatprep.subr.bf16.mxu0 0
    %316 = vmatpush1.bf16.msra.mxu0 %v308
    %317 = vmatprep.subr.bf16.mxu0 0
    %318 = vmatpush1.bf16.msra.mxu0 %v309
    %319 = vmatprep.subr.bf16.mxu0 0
    %320 = vmatpush1.bf16.msra.mxu0 0
    %321 = vmatprep.subr.bf16.mxu0 0
    %322 = vmatpush1.bf16.msra.mxu0 0
    %323 = vmatprep.subr.bf16.mxu0 0
    %324 = vmatpush1.bf16.msra.mxu0 0
    %325 = vmatprep.subr.bf16.mxu0 0
    %326 = vmatpush1.bf16.msra.mxu0 0
    %327 = vmatprep.subr.bf16.mxu0 0
    %328 = vmatpush1.bf16.msra.mxu0 0
    %329 = vmatprep.subr.bf16.mxu0 0
    %330 = vmatpush1.bf16.msra.mxu0 0
    %331 = vmatprep.subr.bf16.mxu0 0
    %332 = vmatpush1.bf16.msra.mxu0 0
    %333 = vmatprep.subr.bf16.mxu0 0
    %334 = vmatpush1.bf16.msra.mxu0 0
    %335 = vmatprep.subr.bf16.mxu0 0
    %336 = vmatpush1.bf16.msra.mxu0 0
    %337 = vmatprep.subr.bf16.mxu0 0
    %338 = vmatpush1.bf16.msra.mxu0 0
    %339 = vmatprep.subr.bf16.mxu0 0
    %340 = vmatpush1.bf16.msra.mxu0 0
    %341 = vmatprep.subr.bf16.mxu0 0
    %342 = vmatpush1.bf16.msra.mxu0 0
    %343 = vmatprep.subr.bf16.mxu0 0
    %344 = vmatpush1.bf16.msra.mxu0 0
    %345 = vmatprep.subr.bf16.mxu0 0
    %346 = vmatpush1.bf16.msra.mxu0 0
    %347 = vmatprep.mubr.bf16.mxu0 0
    %348 = vmatmul.mubr.bf16.gmra.mrb[0].mxu0 %v313
    %v349 = vpop.f32.mrb[0].mxu0
    %v350 = vadd.f32 %v298, %v349
    %v351 = vpop.f32.mrb[0].mxu0
    %v352 = vpop.f32.mrb[0].mxu0
    %v353 = vadd.f32 %v298, %v352
    %v354 = vpop.f32.mrb[0].mxu0
    %355 = vdwg.mxu0
    %v356 = vmax.f32 %v350, 0.0
    %v357 = vmax.f32 %v353, 0.0
    %v358 = vpack.c.bf16 %v357, %v356
    %v359 = vld [vmem:[#allocation11] sm:$0xf]
    %v360 = vld [vmem:[#allocation11 + $0x4] sm:$0xf]
    %v361 = vld [vmem:[#allocation11 + $0x8] sm:$0xf]
    %v362 = vld [vmem:[#allocation11 + $0xc] sm:$0xf]
    %v363 = vld [vmem:[%s8] sm:$0x1]
    %v365 = vlaneseq
    %v366 = vshrl.u32 %v365, 7
    %v367 = vsub.s32 0, %v366
    %v368 = vrot.slane %v363, %v367
    %v374 = vunpack.c.l.b16 %v359
    %v375 = vunpack.c.l.b16 %v360
    %v376 = vunpack.c.l.b16 %v361
    %v377 = vunpack.c.l.b16 %v362
    %v378 = vpack.c.b16 %v375, %v374
    %v379 = vpack.c.b16 %v377, %v376
    %v383 = vsel %vm171, %v358, 0
    %385 = vmatprep.subr.bf16.mxu0 0
    %386 = vmatpush1.bf16.msra.mxu0 %v378
    %387 = vmatprep.subr.bf16.mxu0 0
    %388 = vmatpush1.bf16.msra.mxu0 %v379
    %389 = vmatprep.subr.bf16.mxu0 0
    %390 = vmatpush1.bf16.msra.mxu0 0
    %391 = vmatprep.subr.bf16.mxu0 0
    %392 = vmatpush1.bf16.msra.mxu0 0
    %393 = vmatprep.subr.bf16.mxu0 0
    %394 = vmatpush1.bf16.msra.mxu0 0
    %395 = vmatprep.subr.bf16.mxu0 0
    %396 = vmatpush1.bf16.msra.mxu0 0
    %397 = vmatprep.subr.bf16.mxu0 0
    %398 = vmatpush1.bf16.msra.mxu0 0
    %399 = vmatprep.subr.bf16.mxu0 0
    %400 = vmatpush1.bf16.msra.mxu0 0
    %401 = vmatprep.subr.bf16.mxu0 0
    %402 = vmatpush1.bf16.msra.mxu0 0
    %403 = vmatprep.subr.bf16.mxu0 0
    %404 = vmatpush1.bf16.msra.mxu0 0
    %405 = vmatprep.subr.bf16.mxu0 0
    %406 = vmatpush1.bf16.msra.mxu0 0
    %407 = vmatprep.subr.bf16.mxu0 0
    %408 = vmatpush1.bf16.msra.mxu0 0
    %409 = vmatprep.subr.bf16.mxu0 0
    %410 = vmatpush1.bf16.msra.mxu0 0
    %411 = vmatprep.subr.bf16.mxu0 0
    %412 = vmatpush1.bf16.msra.mxu0 0
    %413 = vmatprep.subr.bf16.mxu0 0
    %414 = vmatpush1.bf16.msra.mxu0 0
    %415 = vmatprep.subr.bf16.mxu0 0
    %416 = vmatpush1.bf16.msra.mxu0 0
    %417 = vmatprep.mubr.bf16.mxu0 0
    %418 = vmatmul.mubr.bf16.gmra.mrb[0].mxu0 %v383
    %v419 = vpop.f32.mrb[0].mxu0
    %v420 = vadd.f32 %v368, %v419
    %v421 = vpop.f32.mrb[0].mxu0
    %v422 = vpop.f32.mrb[0].mxu0
    %v423 = vadd.f32 %v368, %v422
    %v424 = vpop.f32.mrb[0].mxu0
    %425 = vdwg.mxu0
    %v426 = vadd.f32 %v284, %v420
    %v427 = vadd.f32 %v285, %v423
    %v428 = vmax.f32 %v426, 0.0
    %v429 = vmax.f32 %v427, 0.0
    %v430 = vpack.c.bf16 %v429, %v428
    %s431 = scalar_lea.vmem [#allocation10], 16
    %v432 = vld [vmem:[%s431] sm:$0xf]
    %v433 = vld [vmem:[%s431 + $0x4] sm:$0xf]
    %v434 = vld [vmem:[%s431 + $0x8] sm:$0xf]
    %v435 = vld [vmem:[%s431 + $0xc] sm:$0xf]
    %s436 = scalar_lea.vmem %s6, 1
    %v437 = vld [vmem:[%s436] sm:$0x1]
    %v439 = vlaneseq
    %v440 = vshrl.u32 %v439, 7
    %v441 = vsub.s32 0, %v440
    %v442 = vrot.slane %v437, %v441
    %v448 = vunpack.c.l.b16 %v432
    %v449 = vunpack.c.l.b16 %v433
    %v450 = vunpack.c.l.b16 %v434
    %v451 = vunpack.c.l.b16 %v435
    %v452 = vpack.c.b16 %v449, %v448
    %v453 = vpack.c.b16 %v451, %v450
    %v457 = vsel %vm171, %v430, 0
    %459 = vmatprep.subr.bf16.mxu0 0
    %460 = vmatpush1.bf16.msra.mxu0 %v452
    %461 = vmatprep.subr.bf16.mxu0 0
    %462 = vmatpush1.bf16.msra.mxu0 %v453
    %463 = vmatprep.subr.bf16.mxu0 0
    %464 = vmatpush1.bf16.msra.mxu0 0
    %465 = vmatprep.subr.bf16.mxu0 0
    %466 = vmatpush1.bf16.msra.mxu0 0
    %467 = vmatprep.subr.bf16.mxu0 0
    %468 = vmatpush1.bf16.msra.mxu0 0
    %469 = vmatprep.subr.bf16.mxu0 0
    %470 = vmatpush1.bf16.msra.mxu0 0
    %471 = vmatprep.subr.bf16.mxu0 0
    %472 = vmatpush1.bf16.msra.mxu0 0
    %473 = vmatprep.subr.bf16.mxu0 0
    %474 = vmatpush1.bf16.msra.mxu0 0
    %475 = vmatprep.subr.bf16.mxu0 0
    %476 = vmatpush1.bf16.msra.mxu0 0
    %477 = vmatprep.subr.bf16.mxu0 0
    %478 = vmatpush1.bf16.msra.mxu0 0
    %479 = vmatprep.subr.bf16.mxu0 0
    %480 = vmatpush1.bf16.msra.mxu0 0
    %481 = vmatprep.subr.bf16.mxu0 0
    %482 = vmatpush1.bf16.msra.mxu0 0
    %483 = vmatprep.subr.bf16.mxu0 0
    %484 = vmatpush1.bf16.msra.mxu0 0
    %485 = vmatprep.subr.bf16.mxu0 0
    %486 = vmatpush1.bf16.msra.mxu0 0
    %487 = vmatprep.subr.bf16.mxu0 0
    %488 = vmatpush1.bf16.msra.mxu0 0
    %489 = vmatprep.subr.bf16.mxu0 0
    %490 = vmatpush1.bf16.msra.mxu0 0
    %491 = vmatprep.mubr.bf16.mxu0 0
    %492 = vmatmul.mubr.bf16.gmra.mrb[0].mxu0 %v457
    %v493 = vpop.f32.mrb[0].mxu0
    %v494 = vadd.f32 %v442, %v493
    %v495 = vpop.f32.mrb[0].mxu0
    %v496 = vpop.f32.mrb[0].mxu0
    %v497 = vadd.f32 %v442, %v496
    %v498 = vpop.f32.mrb[0].mxu0
    %499 = vdwg.mxu0
    %v500 = vmax.f32 %v494, 0.0
    %v501 = vmax.f32 %v497, 0.0
    %v502 = vpack.c.bf16 %v501, %v500
    %s503 = scalar_lea.vmem [#allocation11], 16
    %v504 = vld [vmem:[%s503] sm:$0xf]
    %v505 = vld [vmem:[%s503 + $0x4] sm:$0xf]
    %v506 = vld [vmem:[%s503 + $0x8] sm:$0xf]
    %v507 = vld [vmem:[%s503 + $0xc] sm:$0xf]
    %s508 = scalar_lea.vmem %s8, 1
    %v509 = vld [vmem:[%s508] sm:$0x1]
    %v511 = vlaneseq
    %v512 = vshrl.u32 %v511, 7
    %v513 = vsub.s32 0, %v512
    %v514 = vrot.slane %v509, %v513
    %v520 = vunpack.c.l.b16 %v504
    %v521 = vunpack.c.l.b16 %v505
    %v522 = vunpack.c.l.b16 %v506
    %v523 = vunpack.c.l.b16 %v507
    %v524 = vpack.c.b16 %v521, %v520
    %v525 = vpack.c.b16 %v523, %v522
    %v529 = vsel %vm171, %v502, 0
    %531 = vmatprep.subr.bf16.mxu0 0
    %532 = vmatpush1.bf16.msra.mxu0 %v524
    %533 = vmatprep.subr.bf16.mxu0 0
    %534 = vmatpush1.bf16.msra.mxu0 %v525
    %535 = vmatprep.subr.bf16.mxu0 0
    %536 = vmatpush1.bf16.msra.mxu0 0
    %537 = vmatprep.subr.bf16.mxu0 0
    %538 = vmatpush1.bf16.msra.mxu0 0
    %539 = vmatprep.subr.bf16.mxu0 0
    %540 = vmatpush1.bf16.msra.mxu0 0
    %541 = vmatprep.subr.bf16.mxu0 0
    %542 = vmatpush1.bf16.msra.mxu0 0
    %543 = vmatprep.subr.bf16.mxu0 0
    %544 = vmatpush1.bf16.msra.mxu0 0
    %545 = vmatprep.subr.bf16.mxu0 0
    %546 = vmatpush1.bf16.msra.mxu0 0
    %547 = vmatprep.subr.bf16.mxu0 0
    %548 = vmatpush1.bf16.msra.mxu0 0
    %549 = vmatprep.subr.bf16.mxu0 0
    %550 = vmatpush1.bf16.msra.mxu0 0
    %551 = vmatprep.subr.bf16.mxu0 0
    %552 = vmatpush1.bf16.msra.mxu0 0
    %553 = vmatprep.subr.bf16.mxu0 0
    %554 = vmatpush1.bf16.msra.mxu0 0
    %555 = vmatprep.subr.bf16.mxu0 0
    %556 = vmatpush1.bf16.msra.mxu0 0
    %557 = vmatprep.subr.bf16.mxu0 0
    %558 = vmatpush1.bf16.msra.mxu0 0
    %559 = vmatprep.subr.bf16.mxu0 0
    %560 = vmatpush1.bf16.msra.mxu0 0
    %561 = vmatprep.subr.bf16.mxu0 0
    %562 = vmatpush1.bf16.msra.mxu0 0
    %563 = vmatprep.mubr.bf16.mxu0 0
    %564 = vmatmul.mubr.bf16.gmra.mrb[0].mxu0 %v529
    %v565 = vpop.f32.mrb[0].mxu0
    %v566 = vadd.f32 %v514, %v565
    %v567 = vpop.f32.mrb[0].mxu0
    %v568 = vpop.f32.mrb[0].mxu0
    %v569 = vadd.f32 %v514, %v568
    %v570 = vpop.f32.mrb[0].mxu0
    %571 = vdwg.mxu0
    %v572 = vadd.f32 %v426, %v566
    %v573 = vadd.f32 %v427, %v569
    %v574 = vmax.f32 %v572, 0.0
    %v575 = vmax.f32 %v573, 0.0
    %v576 = vpack.c.bf16 %v575, %v574
    %v577 = vld [vmem:[%s9] sm:$0xf]
    %v578 = vld [vmem:[%s9 + $0x4] sm:$0xf]
    %v579 = vld [vmem:[%s9 + $0x8] sm:$0xf]
    %v580 = vld [vmem:[%s9 + $0xc] sm:$0xf]
    %v581 = vld [vmem:[%s10] sm:$0x1]
    %v583 = vlaneseq
    %v584 = vshrl.u32 %v583, 7
    %v585 = vsub.s32 0, %v584
    %v586 = vrot.slane %v581, %v585
    %v592 = vunpack.c.l.b16 %v577
    %v593 = vunpack.c.l.b16 %v578
    %v594 = vunpack.c.l.b16 %v579
    %v595 = vunpack.c.l.b16 %v580
    %v596 = vpack.c.b16 %v593, %v592
    %v597 = vpack.c.b16 %v595, %v594
    %v601 = vsel %vm171, %v576, 0
    %603 = vmatprep.subr.bf16.mxu0 0
    %604 = vmatpush1.bf16.msra.mxu0 %v596
    %605 = vmatprep.subr.bf16.mxu0 0
    %606 = vmatpush1.bf16.msra.mxu0 %v597
    %607 = vmatprep.subr.bf16.mxu0 0
    %608 = vmatpush1.bf16.msra.mxu0 0
    %609 = vmatprep.subr.bf16.mxu0 0
    %610 = vmatpush1.bf16.msra.mxu0 0
    %611 = vmatprep.subr.bf16.mxu0 0
    %612 = vmatpush1.bf16.msra.mxu0 0
    %613 = vmatprep.subr.bf16.mxu0 0
    %614 = vmatpush1.bf16.msra.mxu0 0
    %615 = vmatprep.subr.bf16.mxu0 0
    %616 = vmatpush1.bf16.msra.mxu0 0
    %617 = vmatprep.subr.bf16.mxu0 0
    %618 = vmatpush1.bf16.msra.mxu0 0
    %619 = vmatprep.subr.bf16.mxu0 0
    %620 = vmatpush1.bf16.msra.mxu0 0
    %621 = vmatprep.subr.bf16.mxu0 0
    %622 = vmatpush1.bf16.msra.mxu0 0
    %623 = vmatprep.subr.bf16.mxu0 0
    %624 = vmatpush1.bf16.msra.mxu0 0
    %625 = vmatprep.subr.bf16.mxu0 0
    %626 = vmatpush1.bf16.msra.mxu0 0
    %627 = vmatprep.subr.bf16.mxu0 0
    %628 = vmatpush1.bf16.msra.mxu0 0
    %629 = vmatprep.subr.bf16.mxu0 0
    %630 = vmatpush1.bf16.msra.mxu0 0
    %631 = vmatprep.subr.bf16.mxu0 0
    %632 = vmatpush1.bf16.msra.mxu0 0
    %633 = vmatprep.subr.bf16.mxu0 0
    %634 = vmatpush1.bf16.msra.mxu0 0
    %635 = vmatprep.mubr.bf16.mxu0 0
    %636 = vmatmul.mubr.bf16.gmra.mrb[0].mxu0 %v601
    %v637 = vpop.f32.mrb[0].mxu0
    %v638 = vadd.f32 %v586, %v637
    %v639 = vpop.f32.mrb[0].mxu0
    %v640 = vpop.f32.mrb[0].mxu0
    %v641 = vadd.f32 %v586, %v640
    %v642 = vpop.f32.mrb[0].mxu0
    %643 = vdwg.mxu0
    %v644 = vmul.f32 %v638, %v638
    %v645 = vmul.f32 %v641, %v641
    %v646 = vld [vmem:[#allocation13] sm:$0xff]
    %v647 = vld [vmem:[#allocation13 + $0x8] sm:$0xff]
    %v648 = vld [vmem:[#allocation13 + $0x10] sm:$0xff]
    %v649 = vld [vmem:[#allocation13 + $0x18] sm:$0xff]
    %v650 = vld [vmem:[#allocation13 + $0x20] sm:$0xff]
    %v651 = vld [vmem:[#allocation13 + $0x28] sm:$0xff]
    %v652 = vld [vmem:[#allocation13 + $0x30] sm:$0xff]
    %v653 = vld [vmem:[#allocation13 + $0x38] sm:$0xff]
    %v654 = vld [vmem:[#allocation13 + $0x40] sm:$0xff]
    %v655 = vld [vmem:[#allocation13 + $0x48] sm:$0xff]
    %v656 = vld [vmem:[#allocation13 + $0x50] sm:$0xff]
    %v657 = vld [vmem:[#allocation13 + $0x58] sm:$0xff]
    %v658 = vld [vmem:[#allocation13 + $0x60] sm:$0xff]
    %v659 = vld [vmem:[#allocation13 + $0x68] sm:$0xff]
    %v660 = vld [vmem:[#allocation13 + $0x70] sm:$0xff]
    %v661 = vld [vmem:[#allocation13 + $0x78] sm:$0xff]
    %662 = vmatprep.subr.mxu0 0.0
    %663 = vmatpush1.msra.mxu0 %v646
    %664 = vmatprep.subr.mxu0 0.0
    %665 = vmatpush1.msra.mxu0 %v647
    %666 = vmatprep.subr.mxu0 0.0
    %667 = vmatpush1.msra.mxu0 %v648
    %668 = vmatprep.subr.mxu0 0.0
    %669 = vmatpush1.msra.mxu0 %v649
    %670 = vmatprep.subr.mxu0 0.0
    %671 = vmatpush1.msra.mxu0 %v650
    %672 = vmatprep.subr.mxu0 0.0
    %673 = vmatpush1.msra.mxu0 %v651
    %674 = vmatprep.subr.mxu0 0.0
    %675 = vmatpush1.msra.mxu0 %v652
    %676 = vmatprep.subr.mxu0 0.0
    %677 = vmatpush1.msra.mxu0 %v653
    %678 = vmatprep.subr.mxu0 0.0
    %679 = vmatpush1.msra.mxu0 %v654
    %680 = vmatprep.subr.mxu0 0.0
    %681 = vmatpush1.msra.mxu0 %v655
    %682 = vmatprep.subr.mxu0 0.0
    %683 = vmatpush1.msra.mxu0 %v656
    %684 = vmatprep.subr.mxu0 0.0
    %685 = vmatpush1.msra.mxu0 %v657
    %686 = vmatprep.subr.mxu0 0.0
    %687 = vmatpush1.msra.mxu0 %v658
    %688 = vmatprep.subr.mxu0 0.0
    %689 = vmatpush1.msra.mxu0 %v659
    %690 = vmatprep.subr.mxu0 0.0
    %691 = vmatpush1.msra.mxu0 %v660
    %692 = vmatprep.subr.mxu0 0.0
    %693 = vmatpush1.msra.mxu0 %v661
    %694 = vmatprep.subr.mxu0 0.0
    %695 = vmatpush1.msra.mxu0 0.0
    %696 = vmatprep.subr.mxu0 0.0
    %697 = vmatpush1.msra.mxu0 0.0
    %698 = vmatprep.subr.mxu0 0.0
    %699 = vmatpush1.msra.mxu0 0.0
    %700 = vmatprep.subr.mxu0 0.0
    %701 = vmatpush1.msra.mxu0 0.0
    %702 = vmatprep.subr.mxu0 0.0
    %703 = vmatpush1.msra.mxu0 0.0
    %704 = vmatprep.subr.mxu0 0.0
    %705 = vmatpush1.msra.mxu0 0.0
    %706 = vmatprep.subr.mxu0 0.0
    %707 = vmatpush1.msra.mxu0 0.0
    %708 = vmatprep.subr.mxu0 0.0
    %709 = vmatpush1.msra.mxu0 0.0
    %710 = vmatprep.subr.mxu0 0.0
    %711 = vmatpush1.msra.mxu0 0.0
    %712 = vmatprep.subr.mxu0 0.0
    %713 = vmatpush1.msra.mxu0 0.0
    %714 = vmatprep.subr.mxu0 0.0
    %715 = vmatpush1.msra.mxu0 0.0
    %716 = vmatprep.subr.mxu0 0.0
    %717 = vmatpush1.msra.mxu0 0.0
    %718 = vmatprep.subr.mxu0 0.0
    %719 = vmatpush1.msra.mxu0 0.0
    %720 = vmatprep.subr.mxu0 0.0
    %721 = vmatpush1.msra.mxu0 0.0
    %722 = vmatprep.subr.mxu0 0.0
    %723 = vmatpush1.msra.mxu0 0.0
    %724 = vmatprep.subr.mxu0 0.0
    %725 = vmatpush1.msra.mxu0 0.0
    %726 = vmatprep.mubr.f32.mxu0 0.0
    %727 = vmatmul.mubr.f32.gmra.mrb[0].mxu0 %v644
    %v728 = vpop.f32.mrb[0].mxu0
    %v729 = vadd.f32 0.0, %v728
    %v730 = vpop.f32.mrb[0].mxu0
    %731 = vmatprep.mubr.f32.mxu0 0.0
    %732 = vmatmul.mubr.f32.gmra.mrb[0].mxu0 %v645
    %v733 = vpop.f32.mrb[0].mxu0
    %v734 = vadd.f32 0.0, %v733
    %v735 = vpop.f32.mrb[0].mxu0
    %736 = vdwg.mxu0
    %v737 = vmax.f32 %v729, 1e-08
    %v738 = vmax.f32 %v734, 1e-08
    %v739 = vrsqrt.pop %v737
    %v740 = vrsqrt.pop %v738
    %v741 = vlaneseq
    %v742 = vand.u32 %v741, 127
    %vm743 = vcmp.lt.s32.totalorder %v742, 14
    %v744 = vmul.f32 %v638, %v739
    %v745 = vmul.f32 %v641, %v740
    %v746 = vsel %vm743, %v638, %v744
    %v747 = vsel %vm743, %v641, %v745
    %748 = vst [vmem:[#allocation14] sm:$0xff] %v746
    %749 = vst [vmem:[#allocation14 + $0x8] sm:$0xff] %v747
    // Predicated region
    $region78: #{tpu_custom_call.1} parent=1 // pred_check
      _
    $region79: #{tpu_custom_call.1} parent=1 // pred_check_branch
      %751 = sbr.rel (0) target = $region81
    $region80: #{tpu_custom_call.1} parent=1 // pred_region
      %s753 = ssub.s32 256, 256
      %754 = vsyncadd [#allocation4], %s753
      %s755 = sshll.u32 [#allocation14], 4
      %s756 = int_to_ptr.vmem [resolvable:$true] %s755
      %761 = dma.vmem_to_hbm [thread:$0]  %s756, 256, %s12, [#allocation4], 128, 128, 8
    $region81: #{tpu_custom_call.1} parent=1 // pred_fallthru
      _
    // Predicated region
    $region82: #{tpu_custom_call.1} parent=1 // pred_check
      _
    $region83: #{tpu_custom_call.1} parent=1 // pred_check_branch
      %763 = sbr.rel (0) target = $region85
    $region84: #{tpu_custom_call.1} parent=1 // pred_region
      %764 = dma.done [#allocation4], 256
    $region85: #{tpu_custom_call.1} parent=1 // pred_fallthru
      _
    %765 = vsyncpa [#allocation3], 1
    %766 = vsyncpa [#allocation6], 1
    %767 = vsyncpa [#allocation9], 1
    %768 = vsyncpa [#allocation12], 1
    %769 = vsyncpa [#allocation4], 1

</llo_original>
